<compile_context>
chip_gen: v7x
topology: tpu7x:2x2x1
jax: 0.10.0
libtpu: 0.0.40
codegen_flags: <defaults>
</compile_context>

<pallas_src>
import jax
import jax.numpy as jnp
from jax.experimental import pallas as pl
from jax.experimental.pallas import tpu as pltpu


# ---------------------------------------------------------------------------
# Pallas kernel: three MXU matmuls + VPU bias/ReLU, f32 accumulation.
# ---------------------------------------------------------------------------
def _mlp3_kernel(x_ref, w1_ref, b1_ref, w2_ref, b2_ref, w3_ref, b3_ref, o_ref):
    h = jnp.dot(x_ref[...], w1_ref[...], preferred_element_type=jnp.float32)
    h = jnp.maximum(h + b1_ref[...], 0.0).astype(w2_ref.dtype)   # (tb, hidden) bf16
    h = jnp.dot(h, w2_ref[...], preferred_element_type=jnp.float32)
    h = jnp.maximum(h + b2_ref[...], 0.0).astype(w3_ref.dtype)   # (tb, hidden) bf16
    h = jnp.dot(h, w3_ref[...], preferred_element_type=jnp.float32)
    h = jnp.maximum(h + b3_ref[...], 0.0)                        # (tb, out) f32
    o_ref[...] = h.astype(o_ref.dtype)


# ---------------------------------------------------------------------------
# Wrapper
# ---------------------------------------------------------------------------
def _round_up(v, m):
    return ((v + m - 1) // m) * m


def mlp3_forward(x, params, *, tile_b=4096, io_dtype=jnp.bfloat16):
    """x: (B, in_dim).  params: [(W1,b1),(W2,b2),(W3,b3)] in torch Linear layout
    (W: (out, in), b: (out,)).  Returns (B, out_dim) in io_dtype."""
    (w1, b1), (w2, b2), (w3, b3) = params
    B, in_dim = x.shape
    hidden = w1.shape[0]
    out_dim = w3.shape[0]

    # --- batch tiling -------------------------------------------------------
    # Multiple of 16 (bf16 sublane packing); clamp so there are >= 2 grid steps
    # (v7x megacore: both TensorCores get a "parallel" step).
    tile_b = max(16, (tile_b // 16) * 16)
    half = max(16, _round_up(-(-B // 2), 16))
    tile_b = min(tile_b, half)
    n_tiles = pl.cdiv(B, tile_b)
    Bp = n_tiles * tile_b

    x = x.astype(io_dtype)
    if Bp != B:
        x = jnp.pad(x, ((0, Bp - B), (0, 0)))      # padded rows sliced off below

    # --- kernel-friendly layouts --------------------------------------------
    # W^T so the kernel does x @ Wt (no in-kernel transposes); biases as f32 rows.
    w1t = w1.T.astype(io_dtype)                    # (in_dim, hidden)
    w2t = w2.T.astype(io_dtype)                    # (hidden, hidden)
    w3t = w3.T.astype(io_dtype)                    # (hidden, out_dim)
    b1r = b1.reshape(1, hidden).astype(jnp.float32)
    b2r = b2.reshape(1, hidden).astype(jnp.float32)
    b3r = b3.reshape(1, out_dim).astype(jnp.float32)
    weights = (w1t, b1r, w2t, b2r, w3t, b3r)

    x_spec = pl.BlockSpec((tile_b, in_dim), lambda i: (i, 0))
    # Constant index_map -> single DMA; Buffered(1) -> single resident copy.
    weight_specs = [
        pl.BlockSpec(w.shape, lambda i: (0, 0), pipeline_mode=pl.Buffered(1))
        for w in weights
    ]
    out_spec = pl.BlockSpec((tile_b, out_dim), lambda i: (i, 0))

    # --- VMEM budget ---------------------------------------------------------
    io_bytes = jnp.dtype(io_dtype).itemsize
    x_tile_bytes = tile_b * in_dim * io_bytes
    out_tile_bytes = tile_b * out_dim * io_bytes
    w_bytes = (in_dim * hidden + hidden * hidden + hidden * out_dim) * io_bytes \
              + (2 * hidden + out_dim) * 4
    inter_bytes = 2 * tile_b * hidden * 4          # live (tile_b, hidden) f32 temps
    headroom = 4 << 20
    vmem_needed = (2 * x_tile_bytes + 2 * out_tile_bytes
                   + w_bytes + inter_bytes + headroom)

    # Resident-weights design: weights must fit alongside the tile buffers.
    # TODO(synk): add a K-tiled (hidden-chunked) accumulator variant for hidden
    # sizes whose resident weights exceed the per-generation VMEM budget.
    assert w_bytes < (48 << 20), "hidden too large for resident-weights kernel"

    compiler_kwargs = dict(dimension_semantics=("parallel",))
    if vmem_needed > (16 << 20):                   # only raise when actually needed
        try:
            vmem_cap = int(pltpu.get_tpu_info().vmem_capacity_bytes)
        except Exception:
            vmem_cap = 64 << 20                    # conservative (v7x per-TC)
        compiler_kwargs["vmem_limit_bytes"] = int(
            min(vmem_needed, vmem_cap - (16 << 20)))

    out = pl.pallas_call(
        _mlp3_kernel,
        out_shape=jax.ShapeDtypeStruct((Bp, out_dim), io_dtype),
        grid_spec=pltpu.PrefetchScalarGridSpec(
            num_scalar_prefetch=0,
            grid=(n_tiles,),
            in_specs=[x_spec] + weight_specs,
            out_specs=out_spec,
        ),
        compiler_params=pltpu.CompilerParams(**compiler_kwargs),
    )(x, *weights)
    return out[:B]


# ---------------------------------------------------------------------------
# Pure-JAX reference mirroring the kernel's bf16-I/O / f32-accumulate numerics.
# ---------------------------------------------------------------------------
def _reference_forward(x, params, io_dtype=jnp.bfloat16):
    y = x.astype(io_dtype).astype(jnp.float32)
    for W, b in params:
        Wt = W.T.astype(io_dtype).astype(jnp.float32)
        y = jnp.maximum(y @ Wt + b.astype(jnp.float32), 0.0)
        y = y.astype(io_dtype).astype(jnp.float32)
    return y


# ---------------------------------------------------------------------------
if __name__ == "__main__":
    in_dim, hidden_dim, out_dim = 32, 64, 32
    B = 200          # not a multiple of the tile -> exercises padding; 2-step grid

    key = jax.random.PRNGKey(0)
    ks = jax.random.split(key, 4)

    def linear_init(k, fan_in, fan_out):
        # PyTorch nn.Linear default init: U(-1/sqrt(fan_in), 1/sqrt(fan_in)).
        kw, kb = jax.random.split(k)
        bound = 1.0 / (fan_in ** 0.5)
        W = jax.random.uniform(kw, (fan_out, fan_in), jnp.float32, -bound, bound)
        b = jax.random.uniform(kb, (fan_out,), jnp.float32, -bound, bound)
        return W, b

    params = [
        linear_init(ks[0], in_dim, hidden_dim),
        linear_init(ks[1], hidden_dim, hidden_dim),
        linear_init(ks[2], hidden_dim, out_dim),
    ]
    x = jax.random.normal(ks[3], (B, in_dim), jnp.float32)

    # Default tile_b=4096 gets clamped to ceil(B/2)=112 here so the "parallel"
    # batch axis still has 2 steps; for real workloads sweep tile_b in 2048-8192.
    y = mlp3_forward(x, params)
    y = jax.block_until_ready(y)

    ref = _reference_forward(x, params)
    assert y.shape == (B, out_dim)
    err = jnp.max(jnp.abs(y.astype(jnp.float32) - ref))
    assert jnp.allclose(y.astype(jnp.float32), ref, rtol=1e-2, atol=1e-2), (
        f"mismatch: max abs err = {float(err)}")

    print("KERNEL_OK")
</pallas_src>

<mosaic_0001>
module attributes {stable_mosaic.version = 11 : i64} {
  func.func @_mlp3_kernel(%arg0: i32, %arg1: memref<112x32xbf16, #tpu.memory_space<vmem>>, %arg2: memref<32x64xbf16, #tpu.memory_space<vmem>>, %arg3: memref<1x64xf32, #tpu.memory_space<vmem>>, %arg4: memref<64x64xbf16, #tpu.memory_space<vmem>>, %arg5: memref<1x64xf32, #tpu.memory_space<vmem>>, %arg6: memref<64x32xbf16, #tpu.memory_space<vmem>>, %arg7: memref<1x32xf32, #tpu.memory_space<vmem>>, %arg8: memref<112x32xbf16, #tpu.memory_space<vmem>>) attributes {dimension_semantics = [#tpu.dimension_semantics<parallel>], iteration_bounds = array<i64: 2>, scalar_prefetch = 0 : i64, scratch_operands = 0 : i64, tpu.core_type = #tpu.core_type<tc>, window_params = [{transform_indices = @transform_0, window_bounds = array<i64: 112, 32>}, {pipeline_mode = #tpu.pipeline_mode<synchronous>, transform_indices = @transform_1, window_bounds = array<i64: 32, 64>}, {pipeline_mode = #tpu.pipeline_mode<synchronous>, transform_indices = @transform_2, window_bounds = array<i64: 1, 64>}, {pipeline_mode = #tpu.pipeline_mode<synchronous>, transform_indices = @transform_3, window_bounds = array<i64: 64, 64>}, {pipeline_mode = #tpu.pipeline_mode<synchronous>, transform_indices = @transform_4, window_bounds = array<i64: 1, 64>}, {pipeline_mode = #tpu.pipeline_mode<synchronous>, transform_indices = @transform_5, window_bounds = array<i64: 64, 32>}, {pipeline_mode = #tpu.pipeline_mode<synchronous>, transform_indices = @transform_6, window_bounds = array<i64: 1, 32>}, {transform_indices = @transform_7, window_bounds = array<i64: 112, 32>}]} {
    %c0 = arith.constant 0 : index
    %c0_0 = arith.constant 0 : index
    %0 = vector.load %arg1[%c0, %c0_0] : memref<112x32xbf16, #tpu.memory_space<vmem>>, vector<112x32xbf16>
    %c0_1 = arith.constant 0 : index
    %c0_2 = arith.constant 0 : index
    %1 = vector.load %arg2[%c0_1, %c0_2] : memref<32x64xbf16, #tpu.memory_space<vmem>>, vector<32x64xbf16>
    %cst = arith.constant dense<0.000000e+00> : vector<112x64xf32>
    %2 = tpu.matmul %0, %1, %cst {dimension_numbers = #tpu.dot_dimension_numbers<[1], [0], [0], [1], [0, 0, 1, 1], [], []>} : vector<112x32xbf16>, vector<32x64xbf16>, vector<112x64xf32> -> vector<112x64xf32>
    %c0_3 = arith.constant 0 : index
    %c0_4 = arith.constant 0 : index
    %3 = vector.load %arg3[%c0_3, %c0_4] : memref<1x64xf32, #tpu.memory_space<vmem>>, vector<1x64xf32>
    %4 = vector.broadcast %3 : vector<1x64xf32> to vector<112x64xf32>
    %5 = arith.addf %2, %4 : vector<112x64xf32>
    %cst_5 = arith.constant 0.000000e+00 : f32
    %6 = vector.broadcast %cst_5 : f32 to vector<112x64xf32>
    %7 = arith.maximumf %5, %6 : vector<112x64xf32>
    %8 = arith.truncf %7 : vector<112x64xf32> to vector<112x64xbf16>
    %c0_6 = arith.constant 0 : index
    %c0_7 = arith.constant 0 : index
    %9 = vector.load %arg4[%c0_6, %c0_7] : memref<64x64xbf16, #tpu.memory_space<vmem>>, vector<64x64xbf16>
    %cst_8 = arith.constant dense<0.000000e+00> : vector<112x64xf32>
    %10 = tpu.matmul %8, %9, %cst_8 {dimension_numbers = #tpu.dot_dimension_numbers<[1], [0], [0], [1], [0, 0, 1, 1], [], []>} : vector<112x64xbf16>, vector<64x64xbf16>, vector<112x64xf32> -> vector<112x64xf32>
    %c0_9 = arith.constant 0 : index
    %c0_10 = arith.constant 0 : index
    %11 = vector.load %arg5[%c0_9, %c0_10] : memref<1x64xf32, #tpu.memory_space<vmem>>, vector<1x64xf32>
    %12 = vector.broadcast %11 : vector<1x64xf32> to vector<112x64xf32>
    %13 = arith.addf %10, %12 : vector<112x64xf32>
    %cst_11 = arith.constant 0.000000e+00 : f32
    %14 = vector.broadcast %cst_11 : f32 to vector<112x64xf32>
    %15 = arith.maximumf %13, %14 : vector<112x64xf32>
    %16 = arith.truncf %15 : vector<112x64xf32> to vector<112x64xbf16>
    %c0_12 = arith.constant 0 : index
    %c0_13 = arith.constant 0 : index
    %17 = vector.load %arg6[%c0_12, %c0_13] : memref<64x32xbf16, #tpu.memory_space<vmem>>, vector<64x32xbf16>
    %cst_14 = arith.constant dense<0.000000e+00> : vector<112x32xf32>
    %18 = tpu.matmul %16, %17, %cst_14 {dimension_numbers = #tpu.dot_dimension_numbers<[1], [0], [0], [1], [0, 0, 1, 1], [], []>} : vector<112x64xbf16>, vector<64x32xbf16>, vector<112x32xf32> -> vector<112x32xf32>
    %c0_15 = arith.constant 0 : index
    %c0_16 = arith.constant 0 : index
    %19 = vector.load %arg7[%c0_15, %c0_16] : memref<1x32xf32, #tpu.memory_space<vmem>>, vector<1x32xf32>
    %20 = vector.broadcast %19 : vector<1x32xf32> to vector<112x32xf32>
    %21 = arith.addf %18, %20 : vector<112x32xf32>
    %cst_17 = arith.constant 0.000000e+00 : f32
    %22 = vector.broadcast %cst_17 : f32 to vector<112x32xf32>
    %23 = arith.maximumf %21, %22 : vector<112x32xf32>
    %24 = arith.truncf %23 : vector<112x32xf32> to vector<112x32xbf16>
    %c0_18 = arith.constant 0 : index
    %c0_19 = arith.constant 0 : index
    %25 = vector.load %arg8[%c0_18, %c0_19] : memref<112x32xbf16, #tpu.memory_space<vmem>>, vector<112x32xbf16>
    tpu.vector_store %arg8[%c0_18, %c0_19], %24 {strides = array<i32>} : memref<112x32xbf16, #tpu.memory_space<vmem>>, vector<112x32xbf16>,
    return
  }
  func.func @transform_0(%arg0: i32) -> (i32, i32) {
    %c0_i32 = arith.constant 0 : i32
    %c0_i32_0 = arith.constant 0 : i32
    return %arg0, %c0_i32 : i32, i32
  }
  func.func @transform_1(%arg0: i32) -> (i32, i32) {
    %c0_i32 = arith.constant 0 : i32
    %c0_i32_0 = arith.constant 0 : i32
    %c0_i32_1 = arith.constant 0 : i32
    return %c0_i32, %c0_i32_0 : i32, i32
  }
  func.func @transform_2(%arg0: i32) -> (i32, i32) {
    %c0_i32 = arith.constant 0 : i32
    %c0_i32_0 = arith.constant 0 : i32
    %c0_i32_1 = arith.constant 0 : i32
    return %c0_i32, %c0_i32_0 : i32, i32
  }
  func.func @transform_3(%arg0: i32) -> (i32, i32) {
    %c0_i32 = arith.constant 0 : i32
    %c0_i32_0 = arith.constant 0 : i32
    %c0_i32_1 = arith.constant 0 : i32
    return %c0_i32, %c0_i32_0 : i32, i32
  }
  func.func @transform_4(%arg0: i32) -> (i32, i32) {
    %c0_i32 = arith.constant 0 : i32
    %c0_i32_0 = arith.constant 0 : i32
    %c0_i32_1 = arith.constant 0 : i32
    return %c0_i32, %c0_i32_0 : i32, i32
  }
  func.func @transform_5(%arg0: i32) -> (i32, i32) {
    %c0_i32 = arith.constant 0 : i32
    %c0_i32_0 = arith.constant 0 : i32
    %c0_i32_1 = arith.constant 0 : i32
    return %c0_i32, %c0_i32_0 : i32, i32
  }
  func.func @transform_6(%arg0: i32) -> (i32, i32) {
    %c0_i32 = arith.constant 0 : i32
    %c0_i32_0 = arith.constant 0 : i32
    %c0_i32_1 = arith.constant 0 : i32
    return %c0_i32, %c0_i32_0 : i32, i32
  }
  func.func @transform_7(%arg0: i32) -> (i32, i32) {
    %c0_i32 = arith.constant 0 : i32
    %c0_i32_0 = arith.constant 0 : i32
    return %arg0, %c0_i32 : i32, i32
  }
}

</mosaic_0001>

<llo_original>
// kernel: tpu_custom_call.1
$region0: #{tpu_custom_call.1}
  #allocation0 [shape = 'u32[]', space=smem, size = 0x4, offset = 0x4, fixed_abs, tag = 'smem constant byte address 0x4 - core index']
  #allocation1 [shape = 'u32[144,128]{1,0:T(1,128)}', space=vmem, size = 0x12000, scoped, tag = 'internal scratch']
  %s0 = inlined_call_operand.vmem [shape: bf16[224,32], index: 0, kind: input, shape index: {}]
  %s1 = inlined_call_operand.vmem [shape: bf16[32,64], index: 1, kind: input, shape index: {}]
  %s2 = inlined_call_operand.vmem [shape: f32[1,64], index: 2, kind: input, shape index: {}]
  %s3 = inlined_call_operand.vmem [shape: bf16[64,64], index: 3, kind: input, shape index: {}]
  %s4 = inlined_call_operand.vmem [shape: f32[1,64], index: 4, kind: input, shape index: {}]
  %s5 = inlined_call_operand.vmem [shape: bf16[64,32], index: 5, kind: input, shape index: {}]
  %s6 = inlined_call_operand.vmem [shape: f32[1,32], index: 6, kind: input, shape index: {}]
  %s7 = inlined_call_operand.vmem [shape: bf16[224,32], index: 7, kind: output, shape index: {}]
  %s8 = sld [smem:[#allocation0]]
  $region61: #{tpu_custom_call.1} parent=0
    _
  %s10 = ssub.s32 1, %s8
  %s11 = scalar_select 0, %s10, %s8
  loop: start=0, step=1, limit=4
  $region2: #{tpu_custom_call.1} parent=0 // loop_pre_header
    _
  $region3: #{tpu_custom_call.1} parent=0 // loop_header
    %s13 = sphi 0, %s17
    %p14 = scmp.ge.s32.totalorder %s13, 4
    %s23 = sphi 0, %s25
    %s26 = sphi 0, %s23
    %s27 = sphi 0, %s26
    %s43 = sphi 0, %s27
    %s47 = sphi 0, %s47
    %s49 = sphi 0, %s47
    %s50 = sphi 0, %s49
    %s64 = sphi 0, %s50
    %s68 = sphi 0, %s68
    %s70 = sphi 0, %s68
    %s71 = sphi 0, %s70
    %s85 = sphi 0, %s71
    %s89 = sphi 0, %s89
    %s91 = sphi 0, %s89
    %s92 = sphi 0, %s91
    %s106 = sphi 0, %s92
    %s110 = sphi 0, %s110
    %s112 = sphi 0, %s110
    %s113 = sphi 0, %s112
    %s127 = sphi 0, %s113
    %s131 = sphi 0, %s131
    %s133 = sphi 0, %s131
    %s134 = sphi 0, %s133
    %s148 = sphi 0, %s134
    %s152 = sphi 0, %s152
    %s154 = sphi 0, %s152
    %s155 = sphi 0, %s154
    %s169 = sphi 0, %s155
    %s175 = sphi 0, %s177
    %s178 = sphi 0, %s175
    %s179 = sphi 0, %s178
    %s195 = sphi 0, %s179
  $region4: #{tpu_custom_call.1} parent=0 // loop_header_branch
    %16 = sbr.rel (%p14) target = $region8
  $region5: #{tpu_custom_call.1} parent=0 // loop_body
    %s18 = ssub.s32 %s13, 1
    %s19 = ssub.s32 %s13, 2
    %s20 = sadd.s32 %s13, 1
    %s21 = ssub.s32 %s13, %s20
    %p22 = scmp.eq.s32.totalorder %s21, 0
    %s24 = sadd.s32 %s23, 1
    %s25 = scalar_select %p22, %s23, %s24
    %p28 = pneg %p22
    %p29 = scmp.eq.s32.totalorder %s13, 1
    %p30 = por %p28, %p29
    %p31 = scmp.ne.s32.totalorder %s23, %s26
    %p32 = scmp.eq.s32.totalorder %s13, 0
    %p33 = por %p31, %p32
    %p34 = scmp.ne.s32.totalorder %s23, %s26
    %p35 = scmp.eq.s32.totalorder %s18, 1
    %p36 = por %p34, %p35
    %p37 = scmp.ne.s32.totalorder %s26, %s27
    %p38 = scmp.eq.s32.totalorder %s18, 0
    %p39 = por %p37, %p38
    %p40 = scmp.ne.s32.totalorder %s26, %s27
    %p41 = scmp.eq.s32.totalorder %s19, 1
    %p42 = por %p40, %p41
    %p44 = scmp.ne.s32.totalorder %s27, %s43
    %p45 = scmp.eq.s32.totalorder %s19, 0
    %p46 = por %p44, %p45
    %s48 = sadd.s32 %s47, 1
    %p51 = scmp.eq.s32.totalorder %s13, 1
    %p52 = scmp.ne.s32.totalorder %s47, %s49
    %p53 = scmp.eq.s32.totalorder %s13, 0
    %p54 = por %p52, %p53
    %p55 = scmp.ne.s32.totalorder %s47, %s49
    %p56 = scmp.eq.s32.totalorder %s18, 1
    %p57 = por %p55, %p56
    %p58 = scmp.ne.s32.totalorder %s49, %s50
    %p59 = scmp.eq.s32.totalorder %s18, 0
    %p60 = por %p58, %p59
    %p61 = scmp.ne.s32.totalorder %s49, %s50
    %p62 = scmp.eq.s32.totalorder %s19, 1
    %p63 = por %p61, %p62
    %p65 = scmp.ne.s32.totalorder %s50, %s64
    %p66 = scmp.eq.s32.totalorder %s19, 0
    %p67 = por %p65, %p66
    %s69 = sadd.s32 %s68, 1
    %p72 = scmp.eq.s32.totalorder %s13, 1
    %p73 = scmp.ne.s32.totalorder %s68, %s70
    %p74 = scmp.eq.s32.totalorder %s13, 0
    %p75 = por %p73, %p74
    %p76 = scmp.ne.s32.totalorder %s68, %s70
    %p77 = scmp.eq.s32.totalorder %s18, 1
    %p78 = por %p76, %p77
    %p79 = scmp.ne.s32.totalorder %s70, %s71
    %p80 = scmp.eq.s32.totalorder %s18, 0
    %p81 = por %p79, %p80
    %p82 = scmp.ne.s32.totalorder %s70, %s71
    %p83 = scmp.eq.s32.totalorder %s19, 1
    %p84 = por %p82, %p83
    %p86 = scmp.ne.s32.totalorder %s71, %s85
    %p87 = scmp.eq.s32.totalorder %s19, 0
    %p88 = por %p86, %p87
    %s90 = sadd.s32 %s89, 1
    %p93 = scmp.eq.s32.totalorder %s13, 1
    %p94 = scmp.ne.s32.totalorder %s89, %s91
    %p95 = scmp.eq.s32.totalorder %s13, 0
    %p96 = por %p94, %p95
    %p97 = scmp.ne.s32.totalorder %s89, %s91
    %p98 = scmp.eq.s32.totalorder %s18, 1
    %p99 = por %p97, %p98
    %p100 = scmp.ne.s32.totalorder %s91, %s92
    %p101 = scmp.eq.s32.totalorder %s18, 0
    %p102 = por %p100, %p101
    %p103 = scmp.ne.s32.totalorder %s91, %s92
    %p104 = scmp.eq.s32.totalorder %s19, 1
    %p105 = por %p103, %p104
    %p107 = scmp.ne.s32.totalorder %s92, %s106
    %p108 = scmp.eq.s32.totalorder %s19, 0
    %p109 = por %p107, %p108
    %s111 = sadd.s32 %s110, 1
    %p114 = scmp.eq.s32.totalorder %s13, 1
    %p115 = scmp.ne.s32.totalorder %s110, %s112
    %p116 = scmp.eq.s32.totalorder %s13, 0
    %p117 = por %p115, %p116
    %p118 = scmp.ne.s32.totalorder %s110, %s112
    %p119 = scmp.eq.s32.totalorder %s18, 1
    %p120 = por %p118, %p119
    %p121 = scmp.ne.s32.totalorder %s112, %s113
    %p122 = scmp.eq.s32.totalorder %s18, 0
    %p123 = por %p121, %p122
    %p124 = scmp.ne.s32.totalorder %s112, %s113
    %p125 = scmp.eq.s32.totalorder %s19, 1
    %p126 = por %p124, %p125
    %p128 = scmp.ne.s32.totalorder %s113, %s127
    %p129 = scmp.eq.s32.totalorder %s19, 0
    %p130 = por %p128, %p129
    %s132 = sadd.s32 %s131, 1
    %p135 = scmp.eq.s32.totalorder %s13, 1
    %p136 = scmp.ne.s32.totalorder %s131, %s133
    %p137 = scmp.eq.s32.totalorder %s13, 0
    %p138 = por %p136, %p137
    %p139 = scmp.ne.s32.totalorder %s131, %s133
    %p140 = scmp.eq.s32.totalorder %s18, 1
    %p141 = por %p139, %p140
    %p142 = scmp.ne.s32.totalorder %s133, %s134
    %p143 = scmp.eq.s32.totalorder %s18, 0
    %p144 = por %p142, %p143
    %p145 = scmp.ne.s32.totalorder %s133, %s134
    %p146 = scmp.eq.s32.totalorder %s19, 1
    %p147 = por %p145, %p146
    %p149 = scmp.ne.s32.totalorder %s134, %s148
    %p150 = scmp.eq.s32.totalorder %s19, 0
    %p151 = por %p149, %p150
    %s153 = sadd.s32 %s152, 1
    %p156 = scmp.eq.s32.totalorder %s13, 1
    %p157 = scmp.ne.s32.totalorder %s152, %s154
    %p158 = scmp.eq.s32.totalorder %s13, 0
    %p159 = por %p157, %p158
    %p160 = scmp.ne.s32.totalorder %s152, %s154
    %p161 = scmp.eq.s32.totalorder %s18, 1
    %p162 = por %p160, %p161
    %p163 = scmp.ne.s32.totalorder %s154, %s155
    %p164 = scmp.eq.s32.totalorder %s18, 0
    %p165 = por %p163, %p164
    %p166 = scmp.ne.s32.totalorder %s154, %s155
    %p167 = scmp.eq.s32.totalorder %s19, 1
    %p168 = por %p166, %p167
    %p170 = scmp.ne.s32.totalorder %s155, %s169
    %p171 = scmp.eq.s32.totalorder %s19, 0
    %p172 = por %p170, %p171
    %s173 = ssub.s32 %s13, %s20
    %p174 = scmp.eq.s32.totalorder %s173, 0
    %s176 = sadd.s32 %s175, 1
    %s177 = scalar_select %p174, %s175, %s176
    %p180 = pneg %p174
    %p181 = scmp.eq.s32.totalorder %s13, 1
    %p182 = por %p180, %p181
    %p183 = scmp.ne.s32.totalorder %s175, %s178
    %p184 = scmp.eq.s32.totalorder %s13, 0
    %p185 = por %p183, %p184
    %p186 = scmp.ne.s32.totalorder %s175, %s178
    %p187 = scmp.eq.s32.totalorder %s18, 1
    %p188 = por %p186, %p187
    %p189 = scmp.ne.s32.totalorder %s178, %s179
    %p190 = scmp.eq.s32.totalorder %s18, 0
    %p191 = por %p189, %p190
    %p192 = scmp.ne.s32.totalorder %s178, %s179
    %p193 = scmp.eq.s32.totalorder %s19, 1
    %p194 = por %p192, %p193
    %p196 = scmp.ne.s32.totalorder %s179, %s195
    %p197 = scmp.eq.s32.totalorder %s19, 0
    %p198 = por %p196, %p197
    %p199 = scmp.le.s32.totalorder 1, %s13
    %p200 = scmp.lt.s32.totalorder %s13, 3
    %p201 = pnand %p199, %p200
    %p202 = pneg %p201
    // Predicated region
    $region9: #{tpu_custom_call.1} parent=5 // pred_check
      _
    $region10: #{tpu_custom_call.1} parent=5 // pred_check_branch
      %204 = sbr.rel (%p201) target = $region12
    $region11: #{tpu_custom_call.1} parent=5 // pred_region
      %s205 = ssub.s32 %s13, 1
      // Predicated region
      $region13: #{tpu_custom_call.1} parent=11 // pred_check
        %p206 = pneg %p60
      $region14: #{tpu_custom_call.1} parent=11 // pred_check_branch
        %208 = sbr.rel (%p206) target = $region16
      $region15: #{tpu_custom_call.1} parent=11 // pred_region
        _
      $region16: #{tpu_custom_call.1} parent=11 // pred_fallthru
        _
      // Predicated region
      $region17: #{tpu_custom_call.1} parent=11 // pred_check
        %p209 = pneg %p81
      $region18: #{tpu_custom_call.1} parent=11 // pred_check_branch
        %211 = sbr.rel (%p209) target = $region20
      $region19: #{tpu_custom_call.1} parent=11 // pred_region
        _
      $region20: #{tpu_custom_call.1} parent=11 // pred_fallthru
        _
      // Predicated region
      $region21: #{tpu_custom_call.1} parent=11 // pred_check
        %p212 = pneg %p102
      $region22: #{tpu_custom_call.1} parent=11 // pred_check_branch
        %214 = sbr.rel (%p212) target = $region24
      $region23: #{tpu_custom_call.1} parent=11 // pred_region
        _
      $region24: #{tpu_custom_call.1} parent=11 // pred_fallthru
        _
      // Predicated region
      $region25: #{tpu_custom_call.1} parent=11 // pred_check
        %p215 = pneg %p123
      $region26: #{tpu_custom_call.1} parent=11 // pred_check_branch
        %217 = sbr.rel (%p215) target = $region28
      $region27: #{tpu_custom_call.1} parent=11 // pred_region
        _
      $region28: #{tpu_custom_call.1} parent=11 // pred_fallthru
        _
      // Predicated region
      $region29: #{tpu_custom_call.1} parent=11 // pred_check
        %p218 = pneg %p144
      $region30: #{tpu_custom_call.1} parent=11 // pred_check_branch
        %220 = sbr.rel (%p218) target = $region32
      $region31: #{tpu_custom_call.1} parent=11 // pred_region
        _
      $region32: #{tpu_custom_call.1} parent=11 // pred_fallthru
        _
      // Predicated region
      $region33: #{tpu_custom_call.1} parent=11 // pred_check
        %p221 = pneg %p165
      $region34: #{tpu_custom_call.1} parent=11 // pred_check_branch
        %223 = sbr.rel (%p221) target = $region36
      $region35: #{tpu_custom_call.1} parent=11 // pred_region
        _
      $region36: #{tpu_custom_call.1} parent=11 // pred_fallthru
        _
    $region12: #{tpu_custom_call.1} parent=5 // pred_fallthru
      _
    %p224 = scmp.lt.s32.totalorder %s13, 2
    // Predicated region
    $region37: #{tpu_custom_call.1} parent=5 // pred_check
      %p225 = pneg %p224
    $region38: #{tpu_custom_call.1} parent=5 // pred_check_branch
      %227 = sbr.rel (%p225) target = $region40
    $region39: #{tpu_custom_call.1} parent=5 // pred_region
      // Predicated region
      $region41: #{tpu_custom_call.1} parent=39 // pred_check
        %p228 = pneg %p33
      $region42: #{tpu_custom_call.1} parent=39 // pred_check_branch
        %230 = sbr.rel (%p228) target = $region44
      $region43: #{tpu_custom_call.1} parent=39 // pred_region
        %s231 = smul.u32 14, %s13
        %p232 = scmp.lt.s32.totalorder %s231, 27
        %s233 = scalar_select %p232, %s231, 27
        %s234 = smul.addr %s233, 4
        %s235 = scalar_lea.vmem %s0, %s234
        %s236 = smul.u32 14, %s13
      $region44: #{tpu_custom_call.1} parent=39 // pred_fallthru
        _
    $region40: #{tpu_custom_call.1} parent=5 // pred_fallthru
      _
    %p237 = scmp.le.s32.totalorder 1, %s13
    %p238 = scmp.lt.s32.totalorder %s13, 3
    %p239 = pnand %p237, %p238
    %p240 = pneg %p239
    // Predicated region
    $region45: #{tpu_custom_call.1} parent=5 // pred_check
      _
    $region46: #{tpu_custom_call.1} parent=5 // pred_check_branch
      %242 = sbr.rel (%p239) target = $region48
    $region47: #{tpu_custom_call.1} parent=5 // pred_region
      %s243 = ssub.s32 %s13, 1
      %s244 = smul.u32 14, %s18
      %p245 = scmp.lt.s32.totalorder %s244, 27
      %s246 = scalar_select %p245, %s244, 27
      %s247 = smul.addr %s246, 4
      %s248 = scalar_lea.vmem %s0, %s247
      %p249 = pneg %p39
      %p250 = pneg %p36
      %p251 = pneg %p60
      %p252 = pneg %p57
      %p253 = pneg %p81
      %p254 = pneg %p78
      %p255 = pneg %p102
      %p256 = pneg %p99
      %p257 = pneg %p123
      %p258 = pneg %p120
      %p259 = pneg %p144
      %p260 = pneg %p141
      %p261 = pneg %p165
      %p262 = pneg %p162
      %p263 = pneg %p191
      %p264 = pneg %p188
      %s265 = smul.u32 14, %s18
      %p266 = scmp.lt.s32.totalorder %s265, 27
      %s267 = scalar_select %p266, %s265, 27
      %s268 = smul.addr %s267, 4
      %s269 = scalar_lea.vmem %s7, %s268
      %s270 = smul.u32 14, %s18
      %p271 = scmp.lt.s32.totalorder %s270, 27
      %s272 = scalar_select %p271, %s270, 27
      %s273 = smul.addr %s272, 4
      %s274 = scalar_lea.vmem %s0, %s273
      %s275 = smul.u32 14, %s18
      %s276 = smul.u32 14, %s18
      %p277 = scmp.lt.s32.totalorder %s276, 27
      %s278 = scalar_select %p277, %s276, 27
      %s279 = smul.addr %s278, 4
      %s280 = scalar_lea.vmem %s7, %s279
      %s281 = smul.u32 14, %s18
      %v283 = vld [vmem:[%s274] sm:$0xf]
      %v284 = vld [vmem:[%s274 + $0x4] sm:$0xf]
      %v285 = vld [vmem:[%s274 + $0x8] sm:$0xf]
      %v286 = vld [vmem:[%s274 + $0xc] sm:$0xf]
      %v287 = vld [vmem:[%s274 + $0x10] sm:$0xf]
      %v288 = vld [vmem:[%s274 + $0x14] sm:$0xf]
      %v289 = vld [vmem:[%s274 + $0x18] sm:$0xf]
      %v290 = vld [vmem:[%s274 + $0x1c] sm:$0xf]
      %v291 = vld [vmem:[%s274 + $0x20] sm:$0xf]
      %v292 = vld [vmem:[%s274 + $0x24] sm:$0xf]
      %v293 = vld [vmem:[%s274 + $0x28] sm:$0xf]
      %v294 = vld [vmem:[%s274 + $0x2c] sm:$0xf]
      %v295 = vld [vmem:[%s274 + $0x30] sm:$0xf]
      %v296 = vld [vmem:[%s274 + $0x34] sm:$0xf]
      %v297 = vld [vmem:[%s1] sm:$0xf]
      %v298 = vld [vmem:[%s1 + $0x4] sm:$0xf]
      %v299 = vld [vmem:[%s1 + $0x8] sm:$0xf]
      %v300 = vld [vmem:[%s1 + $0xc] sm:$0xf]
      %v301 = vld [vmem:[%s2] sm:$0x1]
      %v303 = vlaneseq
      %v304 = vshrl.u32 %v303, 7
      %v305 = vsub.s32 0, %v304
      %v306 = vrot.slane %v301, %v305
      %v322 = vunpack.c.l.b16 %v283
      %v323 = vunpack.c.l.b16 %v284
      %v324 = vunpack.c.l.b16 %v285
      %v325 = vunpack.c.l.b16 %v286
      %v326 = vunpack.c.l.b16 %v287
      %v327 = vunpack.c.l.b16 %v288
      %v328 = vunpack.c.l.b16 %v289
      %v329 = vunpack.c.l.b16 %v290
      %v330 = vunpack.c.l.b16 %v291
      %v331 = vunpack.c.l.b16 %v292
      %v332 = vunpack.c.l.b16 %v293
      %v333 = vunpack.c.l.b16 %v294
      %v334 = vunpack.c.l.b16 %v295
      %v335 = vunpack.c.l.b16 %v296
      %v336 = vpack.c.b16 %v323, %v322
      %v337 = vpack.c.b16 %v325, %v324
      %v338 = vpack.c.b16 %v327, %v326
      %v339 = vpack.c.b16 %v329, %v328
      %v340 = vpack.c.b16 %v331, %v330
      %v341 = vpack.c.b16 %v333, %v332
      %v342 = vpack.c.b16 %v335, %v334
      %v347 = vunpack.c.l.b16 %v297
      %v348 = vunpack.c.l.b16 %v298
      %v349 = vunpack.c.l.b16 %v299
      %v350 = vunpack.c.l.b16 %v300
      %v351 = vpack.c.b16 %v348, %v347
      %v352 = vpack.c.b16 %v350, %v349
      %vm355 = vcmask 261120
      %v357 = vsel %vm355, %v336, 0
      %v360 = vsel %vm355, %v337, 0
      %v363 = vsel %vm355, %v338, 0
      %v366 = vsel %vm355, %v339, 0
      %v369 = vsel %vm355, %v340, 0
      %v372 = vsel %vm355, %v341, 0
      %v375 = vsel %vm355, %v342, 0
      %377 = vmatprep.subr.bf16.mxu0 0
      %378 = vmatpush1.bf16.msra.mxu0 %v351
      %379 = vmatprep.subr.bf16.mxu0 0
      %380 = vmatpush1.bf16.msra.mxu0 %v352
      %381 = vmatprep.subr.bf16.mxu0 0
      %382 = vmatpush1.bf16.msra.mxu0 0
      %383 = vmatprep.subr.bf16.mxu0 0
      %384 = vmatpush1.bf16.msra.mxu0 0
      %385 = vmatprep.subr.bf16.mxu0 0
      %386 = vmatpush1.bf16.msra.mxu0 0
      %387 = vmatprep.subr.bf16.mxu0 0
      %388 = vmatpush1.bf16.msra.mxu0 0
      %389 = vmatprep.subr.bf16.mxu0 0
      %390 = vmatpush1.bf16.msra.mxu0 0
      %391 = vmatprep.subr.bf16.mxu0 0
      %392 = vmatpush1.bf16.msra.mxu0 0
      %393 = vmatprep.subr.bf16.mxu0 0
      %394 = vmatpush1.bf16.msra.mxu0 0
      %395 = vmatprep.subr.bf16.mxu0 0
      %396 = vmatpush1.bf16.msra.mxu0 0
      %397 = vmatprep.subr.bf16.mxu0 0
      %398 = vmatpush1.bf16.msra.mxu0 0
      %399 = vmatprep.subr.bf16.mxu0 0
      %400 = vmatpush1.bf16.msra.mxu0 0
      %401 = vmatprep.subr.bf16.mxu0 0
      %402 = vmatpush1.bf16.msra.mxu0 0
      %403 = vmatprep.subr.bf16.mxu0 0
      %404 = vmatpush1.bf16.msra.mxu0 0
      %405 = vmatprep.subr.bf16.mxu0 0
      %406 = vmatpush1.bf16.msra.mxu0 0
      %407 = vmatprep.subr.bf16.mxu0 0
      %408 = vmatpush1.bf16.msra.mxu0 0
      %409 = vmatprep.mubr.bf16.mxu0 0
      %410 = vmatmul.mubr.bf16.gmra.mrb[0].mxu0 %v357
      %v411 = vpop.f32.mrb[0].mxu0
      %v412 = vadd.f32 %v306, %v411
      %v413 = vpop.f32.mrb[0].mxu0
      %v414 = vpop.f32.mrb[0].mxu0
      %v415 = vadd.f32 %v306, %v414
      %v416 = vpop.f32.mrb[0].mxu0
      %417 = vmatprep.mubr.bf16.mxu0 0
      %418 = vmatmul.mubr.bf16.gmra.mrb[0].mxu0 %v360
      %v419 = vpop.f32.mrb[0].mxu0
      %v420 = vadd.f32 %v306, %v419
      %v421 = vpop.f32.mrb[0].mxu0
      %v422 = vpop.f32.mrb[0].mxu0
      %v423 = vadd.f32 %v306, %v422
      %v424 = vpop.f32.mrb[0].mxu0
      %425 = vmatprep.mubr.bf16.mxu0 0
      %426 = vmatmul.mubr.bf16.gmra.mrb[0].mxu0 %v363
      %v427 = vpop.f32.mrb[0].mxu0
      %v428 = vadd.f32 %v306, %v427
      %v429 = vpop.f32.mrb[0].mxu0
      %v430 = vpop.f32.mrb[0].mxu0
      %v431 = vadd.f32 %v306, %v430
      %v432 = vpop.f32.mrb[0].mxu0
      %433 = vmatprep.mubr.bf16.mxu0 0
      %434 = vmatmul.mubr.bf16.gmra.mrb[0].mxu0 %v366
      %v435 = vpop.f32.mrb[0].mxu0
      %v436 = vadd.f32 %v306, %v435
      %v437 = vpop.f32.mrb[0].mxu0
      %v438 = vpop.f32.mrb[0].mxu0
      %v439 = vadd.f32 %v306, %v438
      %v440 = vpop.f32.mrb[0].mxu0
      %441 = vmatprep.mubr.bf16.mxu0 0
      %442 = vmatmul.mubr.bf16.gmra.mrb[0].mxu0 %v369
      %v443 = vpop.f32.mrb[0].mxu0
      %v444 = vadd.f32 %v306, %v443
      %v445 = vpop.f32.mrb[0].mxu0
      %v446 = vpop.f32.mrb[0].mxu0
      %v447 = vadd.f32 %v306, %v446
      %v448 = vpop.f32.mrb[0].mxu0
      %449 = vmatprep.mubr.bf16.mxu0 0
      %450 = vmatmul.mubr.bf16.gmra.mrb[0].mxu0 %v372
      %v451 = vpop.f32.mrb[0].mxu0
      %v452 = vadd.f32 %v306, %v451
      %v453 = vpop.f32.mrb[0].mxu0
      %v454 = vpop.f32.mrb[0].mxu0
      %v455 = vadd.f32 %v306, %v454
      %v456 = vpop.f32.mrb[0].mxu0
      %457 = vmatprep.mubr.bf16.mxu0 0
      %458 = vmatmul.mubr.bf16.gmra.mrb[0].mxu0 %v375
      %v459 = vpop.f32.mrb[0].mxu0
      %v460 = vadd.f32 %v306, %v459
      %v461 = vpop.f32.mrb[0].mxu0
      %v462 = vpop.f32.mrb[0].mxu0
      %v463 = vadd.f32 %v306, %v462
      %v464 = vpop.f32.mrb[0].mxu0
      %465 = vdwg.mxu0
      %v466 = vmax.f32 %v412, 0.0
      %v467 = vmax.f32 %v415, 0.0
      %v468 = vmax.f32 %v420, 0.0
      %v469 = vmax.f32 %v423, 0.0
      %v470 = vmax.f32 %v428, 0.0
      %v471 = vmax.f32 %v431, 0.0
      %v472 = vmax.f32 %v436, 0.0
      %v473 = vmax.f32 %v439, 0.0
      %v474 = vmax.f32 %v444, 0.0
      %v475 = vmax.f32 %v447, 0.0
      %v476 = vmax.f32 %v452, 0.0
      %v477 = vmax.f32 %v455, 0.0
      %v478 = vmax.f32 %v460, 0.0
      %v479 = vmax.f32 %v463, 0.0
      %v480 = vpack.c.bf16 %v467, %v466
      %v481 = vpack.c.bf16 %v469, %v468
      %v482 = vpack.c.bf16 %v471, %v470
      %v483 = vpack.c.bf16 %v473, %v472
      %v484 = vpack.c.bf16 %v475, %v474
      %v485 = vpack.c.bf16 %v477, %v476
      %v486 = vpack.c.bf16 %v479, %v478
      %v487 = vld [vmem:[%s3] sm:$0xf]
      %v488 = vld [vmem:[%s3 + $0x4] sm:$0xf]
      %v489 = vld [vmem:[%s3 + $0x8] sm:$0xf]
      %v490 = vld [vmem:[%s3 + $0xc] sm:$0xf]
      %v491 = vld [vmem:[%s3 + $0x10] sm:$0xf]
      %v492 = vld [vmem:[%s3 + $0x14] sm:$0xf]
      %v493 = vld [vmem:[%s3 + $0x18] sm:$0xf]
      %v494 = vld [vmem:[%s3 + $0x1c] sm:$0xf]
      %v495 = vld [vmem:[%s4] sm:$0x1]
      %v497 = vlaneseq
      %v498 = vshrl.u32 %v497, 7
      %v499 = vsub.s32 0, %v498
      %v500 = vrot.slane %v495, %v499
      %v510 = vunpack.c.l.b16 %v487
      %v511 = vunpack.c.l.b16 %v488
      %v512 = vunpack.c.l.b16 %v489
      %v513 = vunpack.c.l.b16 %v490
      %v514 = vunpack.c.l.b16 %v491
      %v515 = vunpack.c.l.b16 %v492
      %v516 = vunpack.c.l.b16 %v493
      %v517 = vunpack.c.l.b16 %v494
      %v518 = vpack.c.b16 %v511, %v510
      %v519 = vpack.c.b16 %v513, %v512
      %v520 = vpack.c.b16 %v515, %v514
      %v521 = vpack.c.b16 %v517, %v516
      %vm526 = vcmask 523264
      %v528 = vsel %vm526, %v480, 0
      %v531 = vsel %vm526, %v481, 0
      %v534 = vsel %vm526, %v482, 0
      %v537 = vsel %vm526, %v483, 0
      %v540 = vsel %vm526, %v484, 0
      %v543 = vsel %vm526, %v485, 0
      %v546 = vsel %vm526, %v486, 0
      %548 = vmatprep.subr.bf16.mxu0 0
      %549 = vmatpush1.bf16.msra.mxu0 %v518
      %550 = vmatprep.subr.bf16.mxu0 0
      %551 = vmatpush1.bf16.msra.mxu0 %v519
      %552 = vmatprep.subr.bf16.mxu0 0
      %553 = vmatpush1.bf16.msra.mxu0 %v520
      %554 = vmatprep.subr.bf16.mxu0 0
      %555 = vmatpush1.bf16.msra.mxu0 %v521
      %556 = vmatprep.subr.bf16.mxu0 0
      %557 = vmatpush1.bf16.msra.mxu0 0
      %558 = vmatprep.subr.bf16.mxu0 0
      %559 = vmatpush1.bf16.msra.mxu0 0
      %560 = vmatprep.subr.bf16.mxu0 0
      %561 = vmatpush1.bf16.msra.mxu0 0
      %562 = vmatprep.subr.bf16.mxu0 0
      %563 = vmatpush1.bf16.msra.mxu0 0
      %564 = vmatprep.subr.bf16.mxu0 0
      %565 = vmatpush1.bf16.msra.mxu0 0
      %566 = vmatprep.subr.bf16.mxu0 0
      %567 = vmatpush1.bf16.msra.mxu0 0
      %568 = vmatprep.subr.bf16.mxu0 0
      %569 = vmatpush1.bf16.msra.mxu0 0
      %570 = vmatprep.subr.bf16.mxu0 0
      %571 = vmatpush1.bf16.msra.mxu0 0
      %572 = vmatprep.subr.bf16.mxu0 0
      %573 = vmatpush1.bf16.msra.mxu0 0
      %574 = vmatprep.subr.bf16.mxu0 0
      %575 = vmatpush1.bf16.msra.mxu0 0
      %576 = vmatprep.subr.bf16.mxu0 0
      %577 = vmatpush1.bf16.msra.mxu0 0
      %578 = vmatprep.subr.bf16.mxu0 0
      %579 = vmatpush1.bf16.msra.mxu0 0
      %580 = vmatprep.mubr.bf16.mxu0 0
      %581 = vmatmul.mubr.bf16.gmra.mrb[0].mxu0 %v528
      %v582 = vpop.f32.mrb[0].mxu0
      %v583 = vadd.f32 %v500, %v582
      %v584 = vpop.f32.mrb[0].mxu0
      %v585 = vpop.f32.mrb[0].mxu0
      %v586 = vadd.f32 %v500, %v585
      %v587 = vpop.f32.mrb[0].mxu0
      %588 = vmatprep.mubr.bf16.mxu0 0
      %589 = vmatmul.mubr.bf16.gmra.mrb[0].mxu0 %v531
      %v590 = vpop.f32.mrb[0].mxu0
      %v591 = vadd.f32 %v500, %v590
      %v592 = vpop.f32.mrb[0].mxu0
      %v593 = vpop.f32.mrb[0].mxu0
      %v594 = vadd.f32 %v500, %v593
      %v595 = vpop.f32.mrb[0].mxu0
      %596 = vmatprep.mubr.bf16.mxu0 0
      %597 = vmatmul.mubr.bf16.gmra.mrb[0].mxu0 %v534
      %v598 = vpop.f32.mrb[0].mxu0
      %v599 = vadd.f32 %v500, %v598
      %v600 = vpop.f32.mrb[0].mxu0
      %v601 = vpop.f32.mrb[0].mxu0
      %v602 = vadd.f32 %v500, %v601
      %v603 = vpop.f32.mrb[0].mxu0
      %604 = vmatprep.mubr.bf16.mxu0 0
      %605 = vmatmul.mubr.bf16.gmra.mrb[0].mxu0 %v537
      %v606 = vpop.f32.mrb[0].mxu0
      %v607 = vadd.f32 %v500, %v606
      %v608 = vpop.f32.mrb[0].mxu0
      %v609 = vpop.f32.mrb[0].mxu0
      %v610 = vadd.f32 %v500, %v609
      %v611 = vpop.f32.mrb[0].mxu0
      %612 = vmatprep.mubr.bf16.mxu0 0
      %613 = vmatmul.mubr.bf16.gmra.mrb[0].mxu0 %v540
      %v614 = vpop.f32.mrb[0].mxu0
      %v615 = vadd.f32 %v500, %v614
      %v616 = vpop.f32.mrb[0].mxu0
      %v617 = vpop.f32.mrb[0].mxu0
      %v618 = vadd.f32 %v500, %v617
      %v619 = vpop.f32.mrb[0].mxu0
      %620 = vmatprep.mubr.bf16.mxu0 0
      %621 = vmatmul.mubr.bf16.gmra.mrb[0].mxu0 %v543
      %v622 = vpop.f32.mrb[0].mxu0
      %v623 = vadd.f32 %v500, %v622
      %v624 = vpop.f32.mrb[0].mxu0
      %v625 = vpop.f32.mrb[0].mxu0
      %v626 = vadd.f32 %v500, %v625
      %v627 = vpop.f32.mrb[0].mxu0
      %628 = vmatprep.mubr.bf16.mxu0 0
      %629 = vmatmul.mubr.bf16.gmra.mrb[0].mxu0 %v546
      %v630 = vpop.f32.mrb[0].mxu0
      %v631 = vadd.f32 %v500, %v630
      %v632 = vpop.f32.mrb[0].mxu0
      %v633 = vpop.f32.mrb[0].mxu0
      %v634 = vadd.f32 %v500, %v633
      %v635 = vpop.f32.mrb[0].mxu0
      %636 = vdwg.mxu0
      %v637 = vmax.f32 %v583, 0.0
      %v638 = vmax.f32 %v586, 0.0
      %v639 = vmax.f32 %v591, 0.0
      %v640 = vmax.f32 %v594, 0.0
      %v641 = vmax.f32 %v599, 0.0
      %v642 = vmax.f32 %v602, 0.0
      %v643 = vmax.f32 %v607, 0.0
      %v644 = vmax.f32 %v610, 0.0
      %v645 = vmax.f32 %v615, 0.0
      %v646 = vmax.f32 %v618, 0.0
      %v647 = vmax.f32 %v623, 0.0
      %v648 = vmax.f32 %v626, 0.0
      %v649 = vmax.f32 %v631, 0.0
      %v650 = vmax.f32 %v634, 0.0
      %v651 = vpack.c.bf16 %v638, %v637
      %v652 = vpack.c.bf16 %v640, %v639
      %v653 = vpack.c.bf16 %v642, %v641
      %v654 = vpack.c.bf16 %v644, %v643
      %v655 = vpack.c.bf16 %v646, %v645
      %v656 = vpack.c.bf16 %v648, %v647
      %v657 = vpack.c.bf16 %v650, %v649
      %v658 = vld [vmem:[%s5] sm:$0xf]
      %v659 = vld [vmem:[%s5 + $0x4] sm:$0xf]
      %v660 = vld [vmem:[%s5 + $0x8] sm:$0xf]
      %v661 = vld [vmem:[%s5 + $0xc] sm:$0xf]
      %v662 = vld [vmem:[%s5 + $0x10] sm:$0xf]
      %v663 = vld [vmem:[%s5 + $0x14] sm:$0xf]
      %v664 = vld [vmem:[%s5 + $0x18] sm:$0xf]
      %v665 = vld [vmem:[%s5 + $0x1c] sm:$0xf]
      %v666 = vld [vmem:[%s6] sm:$0x1]
      %v668 = vlaneseq
      %v669 = vshrl.u32 %v668, 7
      %v670 = vsub.s32 0, %v669
      %v671 = vrot.slane %v666, %v670
      %v681 = vunpack.c.l.b16 %v658
      %v682 = vunpack.c.l.b16 %v659
      %v683 = vunpack.c.l.b16 %v660
      %v684 = vunpack.c.l.b16 %v661
      %v685 = vunpack.c.l.b16 %v662
      %v686 = vunpack.c.l.b16 %v663
      %v687 = vunpack.c.l.b16 %v664
      %v688 = vunpack.c.l.b16 %v665
      %v689 = vpack.c.b16 %v682, %v681
      %v690 = vpack.c.b16 %v684, %v683
      %v691 = vpack.c.b16 %v686, %v685
      %v692 = vpack.c.b16 %v688, %v687
      %v698 = vsel %vm526, %v651, 0
      %v701 = vsel %vm526, %v652, 0
      %v704 = vsel %vm526, %v653, 0
      %v707 = vsel %vm526, %v654, 0
      %v710 = vsel %vm526, %v655, 0
      %v713 = vsel %vm526, %v656, 0
      %v716 = vsel %vm526, %v657, 0
      %718 = vmatprep.subr.bf16.mxu0 0
      %719 = vmatpush1.bf16.msra.mxu0 %v689
      %720 = vmatprep.subr.bf16.mxu0 0
      %721 = vmatpush1.bf16.msra.mxu0 %v690
      %722 = vmatprep.subr.bf16.mxu0 0
      %723 = vmatpush1.bf16.msra.mxu0 %v691
      %724 = vmatprep.subr.bf16.mxu0 0
      %725 = vmatpush1.bf16.msra.mxu0 %v692
      %726 = vmatprep.subr.bf16.mxu0 0
      %727 = vmatpush1.bf16.msra.mxu0 0
      %728 = vmatprep.subr.bf16.mxu0 0
      %729 = vmatpush1.bf16.msra.mxu0 0
      %730 = vmatprep.subr.bf16.mxu0 0
      %731 = vmatpush1.bf16.msra.mxu0 0
      %732 = vmatprep.subr.bf16.mxu0 0
      %733 = vmatpush1.bf16.msra.mxu0 0
      %734 = vmatprep.subr.bf16.mxu0 0
      %735 = vmatpush1.bf16.msra.mxu0 0
      %736 = vmatprep.subr.bf16.mxu0 0
      %737 = vmatpush1.bf16.msra.mxu0 0
      %738 = vmatprep.subr.bf16.mxu0 0
      %739 = vmatpush1.bf16.msra.mxu0 0
      %740 = vmatprep.subr.bf16.mxu0 0
      %741 = vmatpush1.bf16.msra.mxu0 0
      %742 = vmatprep.subr.bf16.mxu0 0
      %743 = vmatpush1.bf16.msra.mxu0 0
      %744 = vmatprep.subr.bf16.mxu0 0
      %745 = vmatpush1.bf16.msra.mxu0 0
      %746 = vmatprep.subr.bf16.mxu0 0
      %747 = vmatpush1.bf16.msra.mxu0 0
      %748 = vmatprep.subr.bf16.mxu0 0
      %749 = vmatpush1.bf16.msra.mxu0 0
      %750 = vmatprep.mubr.bf16.mxu0 0
      %751 = vmatmul.mubr.bf16.gmra.mrb[0].mxu0 %v698
      %v752 = vpop.f32.mrb[0].mxu0
      %v753 = vadd.f32 %v671, %v752
      %v754 = vpop.f32.mrb[0].mxu0
      %v755 = vpop.f32.mrb[0].mxu0
      %v756 = vadd.f32 %v671, %v755
      %v757 = vpop.f32.mrb[0].mxu0
      %758 = vmatprep.mubr.bf16.mxu0 0
      %759 = vmatmul.mubr.bf16.gmra.mrb[0].mxu0 %v701
      %v760 = vpop.f32.mrb[0].mxu0
      %v761 = vadd.f32 %v671, %v760
      %v762 = vpop.f32.mrb[0].mxu0
      %v763 = vpop.f32.mrb[0].mxu0
      %v764 = vadd.f32 %v671, %v763
      %v765 = vpop.f32.mrb[0].mxu0
      %766 = vmatprep.mubr.bf16.mxu0 0
      %767 = vmatmul.mubr.bf16.gmra.mrb[0].mxu0 %v704
      %v768 = vpop.f32.mrb[0].mxu0
      %v769 = vadd.f32 %v671, %v768
      %v770 = vpop.f32.mrb[0].mxu0
      %v771 = vpop.f32.mrb[0].mxu0
      %v772 = vadd.f32 %v671, %v771
      %v773 = vpop.f32.mrb[0].mxu0
      %774 = vmatprep.mubr.bf16.mxu0 0
      %775 = vmatmul.mubr.bf16.gmra.mrb[0].mxu0 %v707
      %v776 = vpop.f32.mrb[0].mxu0
      %v777 = vadd.f32 %v671, %v776
      %v778 = vpop.f32.mrb[0].mxu0
      %v779 = vpop.f32.mrb[0].mxu0
      %v780 = vadd.f32 %v671, %v779
      %v781 = vpop.f32.mrb[0].mxu0
      %782 = vmatprep.mubr.bf16.mxu0 0
      %783 = vmatmul.mubr.bf16.gmra.mrb[0].mxu0 %v710
      %v784 = vpop.f32.mrb[0].mxu0
      %v785 = vadd.f32 %v671, %v784
      %v786 = vpop.f32.mrb[0].mxu0
      %v787 = vpop.f32.mrb[0].mxu0
      %v788 = vadd.f32 %v671, %v787
      %v789 = vpop.f32.mrb[0].mxu0
      %790 = vmatprep.mubr.bf16.mxu0 0
      %791 = vmatmul.mubr.bf16.gmra.mrb[0].mxu0 %v713
      %v792 = vpop.f32.mrb[0].mxu0
      %v793 = vadd.f32 %v671, %v792
      %v794 = vpop.f32.mrb[0].mxu0
      %v795 = vpop.f32.mrb[0].mxu0
      %v796 = vadd.f32 %v671, %v795
      %v797 = vpop.f32.mrb[0].mxu0
      %798 = vmatprep.mubr.bf16.mxu0 0
      %799 = vmatmul.mubr.bf16.gmra.mrb[0].mxu0 %v716
      %v800 = vpop.f32.mrb[0].mxu0
      %v801 = vadd.f32 %v671, %v800
      %v802 = vpop.f32.mrb[0].mxu0
      %v803 = vpop.f32.mrb[0].mxu0
      %v804 = vadd.f32 %v671, %v803
      %v805 = vpop.f32.mrb[0].mxu0
      %806 = vdwg.mxu0
      %v807 = vmax.f32 %v753, 0.0
      %v808 = vmax.f32 %v756, 0.0
      %v809 = vmax.f32 %v761, 0.0
      %v810 = vmax.f32 %v764, 0.0
      %v811 = vmax.f32 %v769, 0.0
      %v812 = vmax.f32 %v772, 0.0
      %v813 = vmax.f32 %v777, 0.0
      %v814 = vmax.f32 %v780, 0.0
      %v815 = vmax.f32 %v785, 0.0
      %v816 = vmax.f32 %v788, 0.0
      %v817 = vmax.f32 %v793, 0.0
      %v818 = vmax.f32 %v796, 0.0
      %v819 = vmax.f32 %v801, 0.0
      %v820 = vmax.f32 %v804, 0.0
      %v821 = vpack.c.bf16 %v808, %v807
      %v822 = vpack.c.bf16 %v810, %v809
      %v823 = vpack.c.bf16 %v812, %v811
      %v824 = vpack.c.bf16 %v814, %v813
      %v825 = vpack.c.bf16 %v816, %v815
      %v826 = vpack.c.bf16 %v818, %v817
      %v827 = vpack.c.bf16 %v820, %v819
      %v835 = vunpack.c.l.b16 %v821
      %v836 = vunpack.c.h.b16 %v821
      %v837 = vunpack.c.l.b16 %v822
      %v838 = vunpack.c.h.b16 %v822
      %v839 = vunpack.c.l.b16 %v823
      %v840 = vunpack.c.h.b16 %v823
      %v841 = vunpack.c.l.b16 %v824
      %v842 = vunpack.c.h.b16 %v824
      %v843 = vunpack.c.l.b16 %v825
      %v844 = vunpack.c.h.b16 %v825
      %v845 = vunpack.c.l.b16 %v826
      %v846 = vunpack.c.h.b16 %v826
      %v847 = vunpack.c.l.b16 %v827
      %v848 = vunpack.c.h.b16 %v827
      %v849 = vpack.c.b16 %v835, %v835
      %v850 = vpack.c.b16 %v836, %v836
      %v851 = vpack.c.b16 %v837, %v837
      %v852 = vpack.c.b16 %v838, %v838
      %v853 = vpack.c.b16 %v839, %v839
      %v854 = vpack.c.b16 %v840, %v840
      %v855 = vpack.c.b16 %v841, %v841
      %v856 = vpack.c.b16 %v842, %v842
      %v857 = vpack.c.b16 %v843, %v843
      %v858 = vpack.c.b16 %v844, %v844
      %v859 = vpack.c.b16 %v845, %v845
      %v860 = vpack.c.b16 %v846, %v846
      %v861 = vpack.c.b16 %v847, %v847
      %v862 = vpack.c.b16 %v848, %v848
      %vm877 = vcmask 257024
      %878 = vst.msk [vmem:[%s280] sm:$0xf] %vm877, %v849
      %879 = vst.msk [vmem:[%s280 + $0x4] sm:$0xf] %vm877, %v850
      %880 = vst.msk [vmem:[%s280 + $0x8] sm:$0xf] %vm877, %v851
      %881 = vst.msk [vmem:[%s280 + $0xc] sm:$0xf] %vm877, %v852
      %882 = vst.msk [vmem:[%s280 + $0x10] sm:$0xf] %vm877, %v853
      %883 = vst.msk [vmem:[%s280 + $0x14] sm:$0xf] %vm877, %v854
      %884 = vst.msk [vmem:[%s280 + $0x18] sm:$0xf] %vm877, %v855
      %885 = vst.msk [vmem:[%s280 + $0x1c] sm:$0xf] %vm877, %v856
      %886 = vst.msk [vmem:[%s280 + $0x20] sm:$0xf] %vm877, %v857
      %887 = vst.msk [vmem:[%s280 + $0x24] sm:$0xf] %vm877, %v858
      %888 = vst.msk [vmem:[%s280 + $0x28] sm:$0xf] %vm877, %v859
      %889 = vst.msk [vmem:[%s280 + $0x2c] sm:$0xf] %vm877, %v860
      %890 = vst.msk [vmem:[%s280 + $0x30] sm:$0xf] %vm877, %v861
      %891 = vst.msk [vmem:[%s280 + $0x34] sm:$0xf] %vm877, %v862
      %s892 = smul.u32 14, %s18
      %p893 = scmp.lt.s32.totalorder %s892, 27
      %s894 = scalar_select %p893, %s892, 27
      %s895 = smul.addr %s894, 4
      %s896 = scalar_lea.vmem %s7, %s895
      // Predicated region
      $region49: #{tpu_custom_call.1} parent=47 // pred_check
        %p897 = pneg %p188
      $region50: #{tpu_custom_call.1} parent=47 // pred_check_branch
        %899 = sbr.rel (%p897) target = $region52
      $region51: #{tpu_custom_call.1} parent=47 // pred_region
        %s900 = smul.u32 14, %s18
      $region52: #{tpu_custom_call.1} parent=47 // pred_fallthru
        _
    $region48: #{tpu_custom_call.1} parent=5 // pred_fallthru
      _
    %p901 = scmp.le.s32.totalorder 2, %s13
    // Predicated region
    $region53: #{tpu_custom_call.1} parent=5 // pred_check
      %p902 = pneg %p901
    $region54: #{tpu_custom_call.1} parent=5 // pred_check_branch
      %904 = sbr.rel (%p902) target = $region56
    $region55: #{tpu_custom_call.1} parent=5 // pred_region
      %s905 = ssub.s32 %s13, 2
      // Predicated region
      $region57: #{tpu_custom_call.1} parent=55 // pred_check
        %p906 = pneg %p194
      $region58: #{tpu_custom_call.1} parent=55 // pred_check_branch
        %908 = sbr.rel (%p906) target = $region60
      $region59: #{tpu_custom_call.1} parent=55 // pred_region
        %s909 = smul.u32 14, %s19
        %p910 = scmp.lt.s32.totalorder %s909, 27
        %s911 = scalar_select %p910, %s909, 27
        %s912 = smul.addr %s911, 4
        %s913 = scalar_lea.vmem %s7, %s912
      $region60: #{tpu_custom_call.1} parent=55 // pred_fallthru
        _
    $region56: #{tpu_custom_call.1} parent=5 // pred_fallthru
      _
  $region6: #{tpu_custom_call.1} parent=0 // loop_footer
    %s17 = sadd.s32 1, %s13
  $region7: #{tpu_custom_call.1} parent=0 // loop_footer_branch
    %12 = sbr.rel target = $region3
  $region8: #{tpu_custom_call.1} parent=0 // loop_exit
    _

</llo_original>
